<compile_context>
chip_gen: v7x
topology: tpu7x:2x2x1
jax: 0.10.0
libtpu: 0.0.40
codegen_flags: <defaults>
</compile_context>

<pallas_src>
import functools
import math

import jax
import jax.numpy as jnp
from jax import lax
from jax.experimental import pallas as pl
from jax.experimental.pallas import tpu as pltpu


_NEG_BIG = -1e30  # additive mask bias; safe in f32/bf16 (would overflow fp16).
_VMEM_LIMIT = 64 * 1024 * 1024


# --------------------- single-pass kernel (also emits attn) ---------------------
def _sdpa_attn_kernel(q_ref, k_ref, v_ref, bias_ref, out_ref, attn_ref,
                      *, inv_temperature):
    # q_ref: (TQ, D), k_ref: (Lk, D), v_ref: (Lk, Dv), bias_ref: (1, Lk)
    # Fold 1/temperature into the q tile: TQ*D muls instead of TQ*Lk.
    q = q_ref[...] * jnp.asarray(inv_temperature, q_ref.dtype)
    # Contract D-vs-D directly (no k transpose anywhere).
    s = lax.dot_general(q, k_ref[...], (((1,), (1,)), ((), ())),
                        preferred_element_type=jnp.float32)
    s = s + bias_ref[...]                       # 0 for valid keys, -1e30 for masked

    m = jnp.max(s, axis=-1, keepdims=True)      # stable softmax over keys (dim=2)
    e = jnp.exp(s - m)
    p = e / jnp.sum(e, axis=-1, keepdims=True)

    # TODO(synk): nn.Dropout(attn_dropout) is train-mode only; eval mode -> identity.
    attn_ref[...] = p.astype(attn_ref.dtype)
    out_ref[...] = jnp.dot(p.astype(v_ref.dtype), v_ref[...],
                           preferred_element_type=jnp.float32).astype(out_ref.dtype)


# --------------------- flash-style kernel (no attn writeback) -------------------
def _sdpa_flash_kernel(q_ref, k_ref, v_ref, bias_ref, out_ref,
                       m_sc, l_sc, acc_sc, *, inv_temperature):
    kv = pl.program_id(2)

    @pl.when(kv == 0)
    def _():
        m_sc[...] = jnp.full_like(m_sc, -jnp.inf)
        l_sc[...] = jnp.zeros_like(l_sc)
        acc_sc[...] = jnp.zeros_like(acc_sc)

    q = q_ref[...] * jnp.asarray(inv_temperature, q_ref.dtype)
    s = lax.dot_general(q, k_ref[...], (((1,), (1,)), ((), ())),
                        preferred_element_type=jnp.float32)
    s = s + bias_ref[...]

    m_prev = m_sc[...]
    m_new = jnp.maximum(m_prev, jnp.max(s, axis=-1, keepdims=True))
    alpha = jnp.exp(m_prev - m_new)
    p = jnp.exp(s - m_new)
    l_sc[...] = alpha * l_sc[...] + jnp.sum(p, axis=-1, keepdims=True)
    acc_sc[...] = alpha * acc_sc[...] + jnp.dot(p.astype(v_ref.dtype), v_ref[...],
                                                preferred_element_type=jnp.float32)
    m_sc[...] = m_new

    @pl.when(kv == pl.num_programs(2) - 1)
    def _():
        # Normalize once after the PV matmul: TQ*Dv muls + an EUP reciprocal.
        out_ref[...] = (acc_sc[...] * pl.reciprocal(l_sc[...], approx=True)
                        ).astype(out_ref.dtype)


# ----------------------------------- wrapper -----------------------------------
def scaled_dot_product_attention(q, k, v, mask, temperature, *,
                                 block_q=128, block_k=512, return_attn=True):
    """q: (B, Lq, D), k: (B, Lk, D), v: (B, Lk, Dv), mask: (B, Lk).

    return_attn=True  -> (out, attn)  (matches the PyTorch module's forward)
    return_attn=False -> out          (flash path; attn never materialized)
    """
    B, Lq, D = q.shape
    Lk = k.shape[1]
    Dv = v.shape[2]
    inv_t = 1.0 / float(temperature)
    bytes_per = q.dtype.itemsize

    # Row-tile over Lq.
    TQ = min(block_q, Lq)
    Lq_pad = pl.cdiv(Lq, TQ) * TQ
    if Lq_pad != Lq:
        q = jnp.pad(q, ((0, 0), (0, Lq_pad - Lq), (0, 0)))

    # Additive mask bias precomputed once: 0 where mask==1, -1e30 where mask==0.
    bias3 = ((mask.astype(jnp.float32) - 1.0) * (-_NEG_BIG)).reshape(B, 1, Lk)

    if return_attn:
        cost = pl.CostEstimate(
            flops=2 * B * Lq_pad * Lk * (D + Dv),
            transcendentals=B * Lq_pad * Lk,
            bytes_accessed=bytes_per * (B * Lq_pad * D + B * Lk * D + B * Lk * Dv
                                        + B * Lq_pad * Dv + B * Lq_pad * Lk)
                           + 4 * B * Lk)
        out, attn = pl.pallas_call(
            functools.partial(_sdpa_attn_kernel, inv_temperature=inv_t),
            grid=(B, Lq_pad // TQ),
            in_specs=[
                pl.BlockSpec((None, TQ, D), lambda b, i: (b, i, 0)),    # q row tile
                pl.BlockSpec((None, Lk, D), lambda b, i: (b, 0, 0)),    # k (natural layout)
                pl.BlockSpec((None, Lk, Dv), lambda b, i: (b, 0, 0)),   # v
                pl.BlockSpec((None, 1, Lk), lambda b, i: (b, 0, 0)),    # mask bias row
            ],
            out_specs=[
                pl.BlockSpec((None, TQ, Dv), lambda b, i: (b, i, 0)),
                pl.BlockSpec((None, TQ, Lk), lambda b, i: (b, i, 0)),
            ],
            out_shape=[
                jax.ShapeDtypeStruct((B, Lq_pad, Dv), q.dtype),
                jax.ShapeDtypeStruct((B, Lq_pad, Lk), q.dtype),
            ],
            compiler_params=pltpu.CompilerParams(
                dimension_semantics=("parallel", "parallel"),
                vmem_limit_bytes=_VMEM_LIMIT),
            cost_estimate=cost,
        )(q, k, v, bias3)
        if Lq_pad != Lq:
            out = out[:, :Lq]
            attn = attn[:, :Lq]
        return out, attn

    # ------------------------- flash path: tile Lk too -------------------------
    TK = min(block_k, Lk)
    Lk_pad = pl.cdiv(Lk, TK) * TK
    if Lk_pad != Lk:
        pad = Lk_pad - Lk
        k = jnp.pad(k, ((0, 0), (0, pad), (0, 0)))
        v = jnp.pad(v, ((0, 0), (0, pad), (0, 0)))
        bias3 = jnp.pad(bias3, ((0, 0), (0, 0), (0, pad)), constant_values=_NEG_BIG)

    cost = pl.CostEstimate(
        flops=2 * B * Lq_pad * Lk_pad * (D + Dv),
        transcendentals=B * Lq_pad * Lk_pad,
        bytes_accessed=bytes_per * (B * Lq_pad * D + B * Lk_pad * D + B * Lk_pad * Dv
                                    + B * Lq_pad * Dv) + 4 * B * Lk_pad)

    out = pl.pallas_call(
        functools.partial(_sdpa_flash_kernel, inv_temperature=inv_t),
        grid=(B, Lq_pad // TQ, Lk_pad // TK),
        in_specs=[
            pl.BlockSpec((None, TQ, D), lambda b, i, j: (b, i, 0)),     # q row tile
            pl.BlockSpec((None, TK, D), lambda b, i, j: (b, j, 0)),     # k tile
            pl.BlockSpec((None, TK, Dv), lambda b, i, j: (b, j, 0)),    # v tile
            pl.BlockSpec((None, 1, TK), lambda b, i, j: (b, 0, j)),     # bias tile
        ],
        out_specs=pl.BlockSpec((None, TQ, Dv), lambda b, i, j: (b, i, 0)),
        out_shape=jax.ShapeDtypeStruct((B, Lq_pad, Dv), q.dtype),
        scratch_shapes=[
            pltpu.VMEM((TQ, 1), jnp.float32),    # running max m
            pltpu.VMEM((TQ, 1), jnp.float32),    # running sum l
            pltpu.VMEM((TQ, Dv), jnp.float32),   # accumulator
        ],
        compiler_params=pltpu.CompilerParams(
            dimension_semantics=("parallel", "parallel", "arbitrary"),
            vmem_limit_bytes=_VMEM_LIMIT),
        cost_estimate=cost,
    )(q, k, v, bias3)

    if Lq_pad != Lq:
        out = out[:, :Lq]
    return out


# ----------------------------------- main -----------------------------------
if __name__ == "__main__":
    B, Lq, Lk, D, Dv = 2, 8, 16, 32, 32
    temperature = math.sqrt(D)

    key = jax.random.PRNGKey(0)
    kq, kk, kv_, km = jax.random.split(key, 4)
    q = jax.random.normal(kq, (B, Lq, D), jnp.float32)
    k = jax.random.normal(kk, (B, Lk, D), jnp.float32)
    v = jax.random.normal(kv_, (B, Lk, Dv), jnp.float32)
    mask = (jax.random.uniform(km, (B, Lk)) > 0.3).astype(jnp.float32)
    mask = mask.at[:, 0].set(1.0)   # at least one valid key per row

    # pure-JAX reference (eval-mode dropout = identity)
    ref_s = jnp.einsum("bqd,bkd->bqk", q, k) / temperature
    ref_s = ref_s - 1e30 * (1.0 - mask[:, None, :])
    ref_attn = jax.nn.softmax(ref_s, axis=2)
    ref_out = jnp.einsum("bqk,bkd->bqd", ref_attn, v)

    # Module-equivalent path: (output, attn), like the PyTorch forward.
    fwd = jax.jit(functools.partial(scaled_dot_product_attention,
                                    temperature=temperature, return_attn=True))
    out, attn = fwd(q, k, v, mask)
    jax.block_until_ready((out, attn))
    assert out.shape == (B, Lq, Dv)
    assert attn.shape == (B, Lq, Lk)
    assert jnp.allclose(attn, ref_attn, atol=1e-5, rtol=1e-4)
    assert jnp.allclose(out, ref_out, atol=1e-4, rtol=1e-4)

    # Fast path: flash-style online softmax, no attn writeback.
    fwd_fast = jax.jit(functools.partial(scaled_dot_product_attention,
                                         temperature=temperature, return_attn=False))
    out_fast = fwd_fast(q, k, v, mask)
    jax.block_until_ready(out_fast)
    assert jnp.allclose(out_fast, ref_out, atol=2e-3, rtol=2e-3)

    # Exercise multi-tile Lk (online softmax across key blocks).
    B2, Lq2, Lk2 = 2, 16, 256
    k2q, k2k, k2v, k2m = jax.random.split(jax.random.PRNGKey(1), 4)
    q2 = jax.random.normal(k2q, (B2, Lq2, D), jnp.float32)
    k2 = jax.random.normal(k2k, (B2, Lk2, D), jnp.float32)
    v2 = jax.random.normal(k2v, (B2, Lk2, Dv), jnp.float32)
    m2 = (jax.random.uniform(k2m, (B2, Lk2)) > 0.3).astype(jnp.float32)
    m2 = m2.at[:, 0].set(1.0)
    ref2_s = jnp.einsum("bqd,bkd->bqk", q2, k2) / temperature \
        - 1e30 * (1.0 - m2[:, None, :])
    ref2_out = jnp.einsum("bqk,bkd->bqd", jax.nn.softmax(ref2_s, axis=2), v2)
    out2 = jax.jit(functools.partial(scaled_dot_product_attention,
                                     temperature=temperature, return_attn=False,
                                     block_q=128, block_k=128))(q2, k2, v2, m2)
    jax.block_until_ready(out2)
    assert jnp.allclose(out2, ref2_out, atol=2e-3, rtol=2e-3)

    print("KERNEL_OK")
</pallas_src>

<mosaic_0001>
module attributes {stable_mosaic.version = 11 : i64} {
  func.func @_sdpa_attn_kernel(%arg0: i32, %arg1: i32, %arg2: memref<1x8x32xf32, #tpu.memory_space<vmem>>, %arg3: memref<1x16x32xf32, #tpu.memory_space<vmem>>, %arg4: memref<1x16x32xf32, #tpu.memory_space<vmem>>, %arg5: memref<1x1x16xf32, #tpu.memory_space<vmem>>, %arg6: memref<1x8x32xf32, #tpu.memory_space<vmem>>, %arg7: memref<1x8x16xf32, #tpu.memory_space<vmem>>) attributes {dimension_semantics = [#tpu.dimension_semantics<parallel>, #tpu.dimension_semantics<parallel>], iteration_bounds = array<i64: 2, 1>, scalar_prefetch = 0 : i64, scratch_operands = 0 : i64, tpu.core_type = #tpu.core_type<tc>, window_params = [{transform_indices = @transform_0, window_bounds = array<i64: 1, 8, 32>}, {transform_indices = @transform_1, window_bounds = array<i64: 1, 16, 32>}, {transform_indices = @transform_2, window_bounds = array<i64: 1, 16, 32>}, {transform_indices = @transform_3, window_bounds = array<i64: 1, 1, 16>}, {transform_indices = @transform_4, window_bounds = array<i64: 1, 8, 32>}, {transform_indices = @transform_5, window_bounds = array<i64: 1, 8, 16>}]} {
    %c0 = arith.constant 0 : index
    %c0_0 = arith.constant 0 : index
    %c0_1 = arith.constant 0 : index
    %0 = vector.load %arg2[%c0, %c0_0, %c0_1] : memref<1x8x32xf32, #tpu.memory_space<vmem>>, vector<1x8x32xf32>
    %1 = vector.shape_cast %0 : vector<1x8x32xf32> to vector<8x32xf32>
    %cst = arith.constant 0.176776692 : f32
    %2 = vector.broadcast %cst : f32 to vector<8x32xf32>
    %3 = arith.mulf %1, %2 : vector<8x32xf32>
    %c0_2 = arith.constant 0 : index
    %c0_3 = arith.constant 0 : index
    %c0_4 = arith.constant 0 : index
    %4 = vector.load %arg3[%c0_2, %c0_3, %c0_4] : memref<1x16x32xf32, #tpu.memory_space<vmem>>, vector<1x16x32xf32>
    %5 = vector.shape_cast %4 : vector<1x16x32xf32> to vector<16x32xf32>
    %cst_5 = arith.constant dense<0.000000e+00> : vector<8x16xf32>
    %6 = tpu.matmul %3, %5, %cst_5 {dimension_numbers = #tpu.dot_dimension_numbers<[1], [1], [0], [0], [0, 0, 1, 0], [], []>} : vector<8x32xf32>, vector<16x32xf32>, vector<8x16xf32> -> vector<8x16xf32>
    %c0_6 = arith.constant 0 : index
    %c0_7 = arith.constant 0 : index
    %c0_8 = arith.constant 0 : index
    %7 = vector.load %arg5[%c0_6, %c0_7, %c0_8] : memref<1x1x16xf32, #tpu.memory_space<vmem>>, vector<1x1x16xf32>
    %8 = vector.shape_cast %7 : vector<1x1x16xf32> to vector<1x16xf32>
    %9 = vector.broadcast %8 : vector<1x16xf32> to vector<8x16xf32>
    %10 = arith.addf %6, %9 : vector<8x16xf32>
    %cst_9 = arith.constant dense<0xFF800000> : vector<8xf32>
    %11 = vector.multi_reduction <maximumf>, %10, %cst_9 [1] : vector<8x16xf32> to vector<8xf32>
    %12 = vector.shape_cast %11 : vector<8xf32> to vector<8x1xf32>
    %13 = vector.broadcast %12 : vector<8x1xf32> to vector<8x16xf32>
    %14 = arith.subf %10, %13 : vector<8x16xf32>
    %15 = math.exp %14 : vector<8x16xf32>
    %cst_10 = arith.constant dense<0.000000e+00> : vector<8xf32>
    %16 = vector.multi_reduction <add>, %15, %cst_10 [1] : vector<8x16xf32> to vector<8xf32>
    %17 = vector.shape_cast %16 : vector<8xf32> to vector<8x1xf32>
    %18 = vector.broadcast %17 : vector<8x1xf32> to vector<8x16xf32>
    %19 = arith.divf %15, %18 : vector<8x16xf32>
    %c0_11 = arith.constant 0 : index
    %c0_12 = arith.constant 0 : index
    %c0_13 = arith.constant 0 : index
    %20 = vector.load %arg7[%c0_11, %c0_12, %c0_13] : memref<1x8x16xf32, #tpu.memory_space<vmem>>, vector<1x8x16xf32>
    %21 = vector.shape_cast %20 : vector<1x8x16xf32> to vector<8x16xf32>
    %22 = vector.shape_cast %19 : vector<8x16xf32> to vector<1x8x16xf32>
    tpu.vector_store %arg7[%c0_11, %c0_12, %c0_13], %22 {strides = array<i32>} : memref<1x8x16xf32, #tpu.memory_space<vmem>>, vector<1x8x16xf32>,
    %c0_14 = arith.constant 0 : index
    %c0_15 = arith.constant 0 : index
    %c0_16 = arith.constant 0 : index
    %23 = vector.load %arg4[%c0_14, %c0_15, %c0_16] : memref<1x16x32xf32, #tpu.memory_space<vmem>>, vector<1x16x32xf32>
    %24 = vector.shape_cast %23 : vector<1x16x32xf32> to vector<16x32xf32>
    %cst_17 = arith.constant dense<0.000000e+00> : vector<8x32xf32>
    %25 = tpu.matmul %19, %24, %cst_17 {dimension_numbers = #tpu.dot_dimension_numbers<[1], [0], [0], [1], [0, 0, 1, 1], [], []>} : vector<8x16xf32>, vector<16x32xf32>, vector<8x32xf32> -> vector<8x32xf32>
    %c0_18 = arith.constant 0 : index
    %c0_19 = arith.constant 0 : index
    %c0_20 = arith.constant 0 : index
    %26 = vector.load %arg6[%c0_18, %c0_19, %c0_20] : memref<1x8x32xf32, #tpu.memory_space<vmem>>, vector<1x8x32xf32>
    %27 = vector.shape_cast %26 : vector<1x8x32xf32> to vector<8x32xf32>
    %28 = vector.shape_cast %25 : vector<8x32xf32> to vector<1x8x32xf32>
    tpu.vector_store %arg6[%c0_18, %c0_19, %c0_20], %28 {strides = array<i32>} : memref<1x8x32xf32, #tpu.memory_space<vmem>>, vector<1x8x32xf32>,
    return
  }
  func.func @transform_0(%arg0: i32, %arg1: i32) -> (i32, i32, i32) {
    %c0_i32 = arith.constant 0 : i32
    %c0_i32_0 = arith.constant 0 : i32
    return %arg0, %arg1, %c0_i32 : i32, i32, i32
  }
  func.func @transform_1(%arg0: i32, %arg1: i32) -> (i32, i32, i32) {
    %c0_i32 = arith.constant 0 : i32
    %c0_i32_0 = arith.constant 0 : i32
    %c0_i32_1 = arith.constant 0 : i32
    return %arg0, %c0_i32, %c0_i32_0 : i32, i32, i32
  }
  func.func @transform_2(%arg0: i32, %arg1: i32) -> (i32, i32, i32) {
    %c0_i32 = arith.constant 0 : i32
    %c0_i32_0 = arith.constant 0 : i32
    %c0_i32_1 = arith.constant 0 : i32
    return %arg0, %c0_i32, %c0_i32_0 : i32, i32, i32
  }
  func.func @transform_3(%arg0: i32, %arg1: i32) -> (i32, i32, i32) {
    %c0_i32 = arith.constant 0 : i32
    %c0_i32_0 = arith.constant 0 : i32
    %c0_i32_1 = arith.constant 0 : i32
    return %arg0, %c0_i32, %c0_i32_0 : i32, i32, i32
  }
  func.func @transform_4(%arg0: i32, %arg1: i32) -> (i32, i32, i32) {
    %c0_i32 = arith.constant 0 : i32
    %c0_i32_0 = arith.constant 0 : i32
    return %arg0, %arg1, %c0_i32 : i32, i32, i32
  }
  func.func @transform_5(%arg0: i32, %arg1: i32) -> (i32, i32, i32) {
    %c0_i32 = arith.constant 0 : i32
    %c0_i32_0 = arith.constant 0 : i32
    return %arg0, %arg1, %c0_i32 : i32, i32, i32
  }
}

</mosaic_0001>

<llo_original>
// kernel: scaled_dot_product_attention.1
$region0: #{scaled_dot_product_attention.1}
  #allocation0 [shape = 'u32[]', space=smem, size = 0x4, offset = 0x4, fixed_abs, tag = 'smem constant byte address 0x4 - core index']
  #allocation1 [shape = 'u32[144,128]{1,0:T(1,128)}', space=vmem, size = 0x12000, scoped, tag = 'internal scratch']
  %s0 = inlined_call_operand.hbm [shape: f32[2,8,32], index: 0, kind: input, shape index: {}]
  %s1 = inlined_call_operand.hbm [shape: f32[2,16,32], index: 1, kind: input, shape index: {}]
  %s2 = inlined_call_operand.hbm [shape: f32[2,16,32], index: 2, kind: input, shape index: {}]
  %s3 = inlined_call_operand.hbm [shape: f32[2,1,16], index: 3, kind: input, shape index: {}]
  %s4 = inlined_call_operand.hbm [shape: f32[2,8,32], index: 4, kind: output, shape index: {0}]
  %s5 = inlined_call_operand.hbm [shape: f32[2,8,16], index: 5, kind: output, shape index: {1}]
  %6 = xla_tuple %s4, %s5
  %s7 = sld [smem:[#allocation0]]
  $region73: #{scaled_dot_product_attention.1} parent=0
    _
  %s9 = ssub.s32 1, %s7
  %s10 = scalar_select 0, %s9, %s7
  $region1: #{scaled_dot_product_attention.1} parent=0
    #allocation2 [shape = 'u8[8192]{0}', space=vmem, size = 0x2000, scoped, tag = 'input window, operand 0']
    #allocation3 [shape = 's32[2]{0}', space=sflag, size = 0x8, scoped, tag = 'scoped memory for scaled_dot_product_attention.1']
    #allocation4 [shape = 's32[2]{0}', space=sflag, size = 0x8, scoped, tag = 'scoped memory for scaled_dot_product_attention.1']
    #allocation5 [shape = 'u8[16384]{0}', space=vmem, size = 0x4000, scoped, tag = 'input window, operand 1']
    #allocation6 [shape = 's32[2]{0}', space=sflag, size = 0x8, scoped, tag = 'scoped memory for scaled_dot_product_attention.1']
    #allocation7 [shape = 'u8[16384]{0}', space=vmem, size = 0x4000, scoped, tag = 'input window, operand 2']
    #allocation8 [shape = 'u8[1024]{0}', space=vmem, size = 0x400, scoped, tag = 'input window, operand 3']
    #allocation9 [shape = 's32[2]{0}', space=sflag, size = 0x8, scoped, tag = 'scoped memory for scaled_dot_product_attention.1']
    #allocation10 [shape = 'u8[8192]{0}', space=vmem, size = 0x2000, scoped, tag = 'output window, operand 0']
    #allocation11 [shape = 'u8[8192]{0}', space=vmem, size = 0x2000, scoped, tag = 'output window, operand 1']
    #allocation12 [shape = 's32[2]{0}', space=sflag, size = 0x8, scoped, tag = 'scoped memory for scaled_dot_product_attention.1']
    %11 = vsyncpa [#allocation3], 0
    %s12 = scalar_lea.sflag [#allocation3], 1
    %13 = vsyncpa %s12, 0
    %14 = vsyncpa [#allocation6], 0
    %s15 = scalar_lea.sflag [#allocation6], 1
    %16 = vsyncpa %s15, 0
    %17 = vsyncpa [#allocation9], 0
    %s18 = scalar_lea.sflag [#allocation9], 1
    %19 = vsyncpa %s18, 0
    %20 = vsyncpa [#allocation4], 0
    %s21 = scalar_lea.sflag [#allocation4], 1
    %22 = vsyncpa %s21, 0
    %23 = vsyncpa [#allocation12], 0
    %s24 = scalar_lea.sflag [#allocation12], 1
    %25 = vsyncpa %s24, 0
    loop: start=0, step=1, limit=4
    $region2: #{scaled_dot_product_attention.1} parent=1 // loop_pre_header
      _
    $region3: #{scaled_dot_product_attention.1} parent=1 // loop_header
      %s27 = sphi 0, %s31
      %p28 = scmp.ge.s32.totalorder %s27, 4
      %s34 = sphi 0, %s46
      %s35 = sphi 0, %s42
      %s36 = sphi 0, %s34
      %s37 = sphi 0, %s35
      %s38 = sphi 0, %s36
      %s39 = sphi 0, %s37
      %s51 = sphi 0, %s53
      %s54 = sphi 0, %s51
      %s55 = sphi 0, %s54
      %s71 = sphi 0, %s55
      %s77 = sphi 0, %s79
      %s80 = sphi 0, %s77
      %s81 = sphi 0, %s80
      %s97 = sphi 0, %s81
      %s103 = sphi 0, %s105
      %s106 = sphi 0, %s103
      %s107 = sphi 0, %s106
      %s123 = sphi 0, %s107
      %s129 = sphi 0, %s131
      %s132 = sphi 0, %s129
      %s133 = sphi 0, %s132
      %s149 = sphi 0, %s133
      %s157 = sphi 0, %s159
      %s160 = sphi 0, %s157
      %s161 = sphi 0, %s160
      %s177 = sphi 0, %s161
      %s185 = sphi 0, %s187
      %s188 = sphi 0, %s185
      %s189 = sphi 0, %s188
      %s205 = sphi 0, %s189
    $region4: #{scaled_dot_product_attention.1} parent=1 // loop_header_branch
      %30 = sbr.rel (%p28) target = $region8
    $region5: #{scaled_dot_product_attention.1} parent=1 // loop_body
      %s32 = ssub.s32 %s27, 1
      %s33 = ssub.s32 %s27, 2
      %s40 = sadd.s32 1, %s35
      %p41 = scmp.ge.s32.totalorder %s40, 1
      %s42 = scalar_select %p41, 0, %s40
      %s43 = sadd.s32 1, %s34
      %s44 = scalar_select %p41, %s43, %s34
      %p45 = scmp.ge.s32.totalorder %s44, 2
      %s46 = scalar_select %p45, 0, %s44
      %s47 = ssub.s32 %s34, %s46
      %s48 = ssub.s32 %s35, %s42
      %s49 = sor.u32 %s47, %s48
      %p50 = scmp.eq.s32.totalorder %s49, 0
      %s52 = sadd.s32 %s51, 1
      %s53 = scalar_select %p50, %s51, %s52
      %p56 = pneg %p50
      %p57 = scmp.eq.s32.totalorder %s27, 1
      %p58 = por %p56, %p57
      %p59 = scmp.ne.s32.totalorder %s51, %s54
      %p60 = scmp.eq.s32.totalorder %s27, 0
      %p61 = por %p59, %p60
      %p62 = scmp.ne.s32.totalorder %s51, %s54
      %p63 = scmp.eq.s32.totalorder %s32, 1
      %p64 = por %p62, %p63
      %p65 = scmp.ne.s32.totalorder %s54, %s55
      %p66 = scmp.eq.s32.totalorder %s32, 0
      %p67 = por %p65, %p66
      %p68 = scmp.ne.s32.totalorder %s54, %s55
      %p69 = scmp.eq.s32.totalorder %s33, 1
      %p70 = por %p68, %p69
      %p72 = scmp.ne.s32.totalorder %s55, %s71
      %p73 = scmp.eq.s32.totalorder %s33, 0
      %p74 = por %p72, %p73
      %s75 = ssub.s32 %s34, %s46
      %p76 = scmp.eq.s32.totalorder %s75, 0
      %s78 = sadd.s32 %s77, 1
      %s79 = scalar_select %p76, %s77, %s78
      %p82 = pneg %p76
      %p83 = scmp.eq.s32.totalorder %s27, 1
      %p84 = por %p82, %p83
      %p85 = scmp.ne.s32.totalorder %s77, %s80
      %p86 = scmp.eq.s32.totalorder %s27, 0
      %p87 = por %p85, %p86
      %p88 = scmp.ne.s32.totalorder %s77, %s80
      %p89 = scmp.eq.s32.totalorder %s32, 1
      %p90 = por %p88, %p89
      %p91 = scmp.ne.s32.totalorder %s80, %s81
      %p92 = scmp.eq.s32.totalorder %s32, 0
      %p93 = por %p91, %p92
      %p94 = scmp.ne.s32.totalorder %s80, %s81
      %p95 = scmp.eq.s32.totalorder %s33, 1
      %p96 = por %p94, %p95
      %p98 = scmp.ne.s32.totalorder %s81, %s97
      %p99 = scmp.eq.s32.totalorder %s33, 0
      %p100 = por %p98, %p99
      %s101 = ssub.s32 %s34, %s46
      %p102 = scmp.eq.s32.totalorder %s101, 0
      %s104 = sadd.s32 %s103, 1
      %s105 = scalar_select %p102, %s103, %s104
      %p108 = pneg %p102
      %p109 = scmp.eq.s32.totalorder %s27, 1
      %p110 = por %p108, %p109
      %p111 = scmp.ne.s32.totalorder %s103, %s106
      %p112 = scmp.eq.s32.totalorder %s27, 0
      %p113 = por %p111, %p112
      %p114 = scmp.ne.s32.totalorder %s103, %s106
      %p115 = scmp.eq.s32.totalorder %s32, 1
      %p116 = por %p114, %p115
      %p117 = scmp.ne.s32.totalorder %s106, %s107
      %p118 = scmp.eq.s32.totalorder %s32, 0
      %p119 = por %p117, %p118
      %p120 = scmp.ne.s32.totalorder %s106, %s107
      %p121 = scmp.eq.s32.totalorder %s33, 1
      %p122 = por %p120, %p121
      %p124 = scmp.ne.s32.totalorder %s107, %s123
      %p125 = scmp.eq.s32.totalorder %s33, 0
      %p126 = por %p124, %p125
      %s127 = ssub.s32 %s34, %s46
      %p128 = scmp.eq.s32.totalorder %s127, 0
      %s130 = sadd.s32 %s129, 1
      %s131 = scalar_select %p128, %s129, %s130
      %p134 = pneg %p128
      %p135 = scmp.eq.s32.totalorder %s27, 1
      %p136 = por %p134, %p135
      %p137 = scmp.ne.s32.totalorder %s129, %s132
      %p138 = scmp.eq.s32.totalorder %s27, 0
      %p139 = por %p137, %p138
      %p140 = scmp.ne.s32.totalorder %s129, %s132
      %p141 = scmp.eq.s32.totalorder %s32, 1
      %p142 = por %p140, %p141
      %p143 = scmp.ne.s32.totalorder %s132, %s133
      %p144 = scmp.eq.s32.totalorder %s32, 0
      %p145 = por %p143, %p144
      %p146 = scmp.ne.s32.totalorder %s132, %s133
      %p147 = scmp.eq.s32.totalorder %s33, 1
      %p148 = por %p146, %p147
      %p150 = scmp.ne.s32.totalorder %s133, %s149
      %p151 = scmp.eq.s32.totalorder %s33, 0
      %p152 = por %p150, %p151
      %s153 = ssub.s32 %s34, %s46
      %s154 = ssub.s32 %s35, %s42
      %s155 = sor.u32 %s153, %s154
      %p156 = scmp.eq.s32.totalorder %s155, 0
      %s158 = sadd.s32 %s157, 1
      %s159 = scalar_select %p156, %s157, %s158
      %p162 = pneg %p156
      %p163 = scmp.eq.s32.totalorder %s27, 1
      %p164 = por %p162, %p163
      %p165 = scmp.ne.s32.totalorder %s157, %s160
      %p166 = scmp.eq.s32.totalorder %s27, 0
      %p167 = por %p165, %p166
      %p168 = scmp.ne.s32.totalorder %s157, %s160
      %p169 = scmp.eq.s32.totalorder %s32, 1
      %p170 = por %p168, %p169
      %p171 = scmp.ne.s32.totalorder %s160, %s161
      %p172 = scmp.eq.s32.totalorder %s32, 0
      %p173 = por %p171, %p172
      %p174 = scmp.ne.s32.totalorder %s160, %s161
      %p175 = scmp.eq.s32.totalorder %s33, 1
      %p176 = por %p174, %p175
      %p178 = scmp.ne.s32.totalorder %s161, %s177
      %p179 = scmp.eq.s32.totalorder %s33, 0
      %p180 = por %p178, %p179
      %s181 = ssub.s32 %s34, %s46
      %s182 = ssub.s32 %s35, %s42
      %s183 = sor.u32 %s181, %s182
      %p184 = scmp.eq.s32.totalorder %s183, 0
      %s186 = sadd.s32 %s185, 1
      %s187 = scalar_select %p184, %s185, %s186
      %p190 = pneg %p184
      %p191 = scmp.eq.s32.totalorder %s27, 1
      %p192 = por %p190, %p191
      %p193 = scmp.ne.s32.totalorder %s185, %s188
      %p194 = scmp.eq.s32.totalorder %s27, 0
      %p195 = por %p193, %p194
      %p196 = scmp.ne.s32.totalorder %s185, %s188
      %p197 = scmp.eq.s32.totalorder %s32, 1
      %p198 = por %p196, %p197
      %p199 = scmp.ne.s32.totalorder %s188, %s189
      %p200 = scmp.eq.s32.totalorder %s32, 0
      %p201 = por %p199, %p200
      %p202 = scmp.ne.s32.totalorder %s188, %s189
      %p203 = scmp.eq.s32.totalorder %s33, 1
      %p204 = por %p202, %p203
      %p206 = scmp.ne.s32.totalorder %s189, %s205
      %p207 = scmp.eq.s32.totalorder %s33, 0
      %p208 = por %p206, %p207
      %p209 = scmp.le.s32.totalorder 1, %s27
      %p210 = scmp.lt.s32.totalorder %s27, 3
      %p211 = pnand %p209, %p210
      %p212 = pneg %p211
      // Predicated region
      $region9: #{scaled_dot_product_attention.1} parent=5 // pred_check
        _
      $region10: #{scaled_dot_product_attention.1} parent=5 // pred_check_branch
        %214 = sbr.rel (%p211) target = $region12
      $region11: #{scaled_dot_product_attention.1} parent=5 // pred_region
        %s215 = ssub.s32 %s27, 1
      $region12: #{scaled_dot_product_attention.1} parent=5 // pred_fallthru
        _
      %p216 = scmp.lt.s32.totalorder %s27, 2
      // Predicated region
      $region13: #{scaled_dot_product_attention.1} parent=5 // pred_check
        %p217 = pneg %p216
      $region14: #{scaled_dot_product_attention.1} parent=5 // pred_check_branch
        %219 = sbr.rel (%p217) target = $region16
      $region15: #{scaled_dot_product_attention.1} parent=5 // pred_region
        // Predicated region
        $region17: #{scaled_dot_product_attention.1} parent=15 // pred_check
          %p220 = pneg %p61
        $region18: #{scaled_dot_product_attention.1} parent=15 // pred_check_branch
          %222 = sbr.rel (%p220) target = $region20
        $region19: #{scaled_dot_product_attention.1} parent=15 // pred_region
          %s223 = sand.u32 %s51, 1
          %s224 = scalar_lea.sflag [#allocation3], %s223
          %s225 = sand.u32 %s51, 1
          %s226 = smul.addr %s225, 8
          %s227 = scalar_lea.vmem [#allocation2], %s226
          %s229 = ssub.s32 128, 128
          %230 = vsyncadd %s224, %s229
          %s231 = sadd.s32 %s35, %s34
          %s232 = smul.addr %s231, 128
          %s233 = scalar_lea.hbm %s0, %s232
          %s235 = sshll.u32 %s227, 4
          %s236 = int_to_ptr.vmem [resolvable:$true] %s235
          %238 = dma.hbm_to_vmem [thread:$0]  %s233, 128, %s236, %s224
        $region20: #{scaled_dot_product_attention.1} parent=15 // pred_fallthru
          _
        // Predicated region
        $region21: #{scaled_dot_product_attention.1} parent=15 // pred_check
          %p239 = pneg %p87
        $region22: #{scaled_dot_product_attention.1} parent=15 // pred_check_branch
          %241 = sbr.rel (%p239) target = $region24
        $region23: #{scaled_dot_product_attention.1} parent=15 // pred_region
          %s242 = sand.u32 %s27, 1
          %s243 = scalar_lea.sflag [#allocation6], %s242
          %s244 = sand.u32 %s77, 1
          %s245 = smul.addr %s244, 16
          %s246 = scalar_lea.vmem [#allocation5], %s245
          %s248 = ssub.s32 256, 256
          %249 = vsyncadd %s243, %s248
          %s250 = smul.addr %s34, 2
          %s251 = smul.addr %s250, 128
          %s252 = scalar_lea.hbm %s1, %s251
          %s253 = sshll.u32 %s246, 4
          %s254 = int_to_ptr.vmem [resolvable:$true] %s253
          %259 = dma.hbm_to_vmem [thread:$0]  %s252, 256, %s254, %s243, 128, 128, 8
        $region24: #{scaled_dot_product_attention.1} parent=15 // pred_fallthru
          _
        // Predicated region
        $region25: #{scaled_dot_product_attention.1} parent=15 // pred_check
          %p260 = pneg %p113
        $region26: #{scaled_dot_product_attention.1} parent=15 // pred_check_branch
          %262 = sbr.rel (%p260) target = $region28
        $region27: #{scaled_dot_product_attention.1} parent=15 // pred_region
          %s263 = sand.u32 %s27, 1
          %s264 = scalar_lea.sflag [#allocation6], %s263
          %s265 = sand.u32 %s103, 1
          %s266 = smul.addr %s265, 16
          %s267 = scalar_lea.vmem [#allocation7], %s266
          %s269 = ssub.s32 256, 256
          %270 = vsyncadd %s264, %s269
          %s271 = smul.addr %s34, 2
          %s272 = smul.addr %s271, 128
          %s273 = scalar_lea.hbm %s2, %s272
          %s274 = sshll.u32 %s267, 4
          %s275 = int_to_ptr.vmem [resolvable:$true] %s274
          %280 = dma.hbm_to_vmem [thread:$0]  %s273, 256, %s275, %s264, 128, 128, 8
        $region28: #{scaled_dot_product_attention.1} parent=15 // pred_fallthru
          _
        // Predicated region
        $region29: #{scaled_dot_product_attention.1} parent=15 // pred_check
          %p281 = pneg %p139
        $region30: #{scaled_dot_product_attention.1} parent=15 // pred_check_branch
          %283 = sbr.rel (%p281) target = $region32
        $region31: #{scaled_dot_product_attention.1} parent=15 // pred_region
          %s284 = sand.u32 %s129, 1
          %s285 = scalar_lea.sflag [#allocation9], %s284
          %s286 = sand.u32 %s129, 1
          %s287 = scalar_lea.vmem [#allocation8], %s286
          %s289 = ssub.s32 16, 16
          %290 = vsyncadd %s285, %s289
          %s291 = smul.addr %s34, 16
          %s292 = scalar_lea.hbm %s3, %s291
          %s294 = sshll.u32 %s287, 4
          %s295 = int_to_ptr.vmem [resolvable:$true] %s294
          %297 = dma.hbm_to_vmem [thread:$0]  %s292, 16, %s295, %s285
        $region32: #{scaled_dot_product_attention.1} parent=15 // pred_fallthru
          _
      $region16: #{scaled_dot_product_attention.1} parent=5 // pred_fallthru
        _
      %p298 = scmp.le.s32.totalorder 1, %s27
      %p299 = scmp.lt.s32.totalorder %s27, 3
      %p300 = pnand %p298, %p299
      %p301 = pneg %p300
      // Predicated region
      $region33: #{scaled_dot_product_attention.1} parent=5 // pred_check
        _
      $region34: #{scaled_dot_product_attention.1} parent=5 // pred_check_branch
        %303 = sbr.rel (%p300) target = $region36
      $region35: #{scaled_dot_product_attention.1} parent=5 // pred_region
        %s304 = ssub.s32 %s27, 1
        %s305 = sand.u32 %s54, 1
        %s306 = scalar_lea.sflag [#allocation3], %s305
        %s307 = sand.u32 %s54, 1
        %s308 = smul.addr %s307, 8
        %s309 = scalar_lea.vmem [#allocation2], %s308
        // Predicated region
        $region37: #{scaled_dot_product_attention.1} parent=35 // pred_check
          %p310 = pneg %p67
        $region38: #{scaled_dot_product_attention.1} parent=35 // pred_check_branch
          %312 = sbr.rel (%p310) target = $region40
        $region39: #{scaled_dot_product_attention.1} parent=35 // pred_region
          %313 = dma.done %s306, 128
        $region40: #{scaled_dot_product_attention.1} parent=35 // pred_fallthru
          _
        %s314 = sand.u32 %s32, 1
        %s315 = scalar_lea.sflag [#allocation6], %s314
        %s316 = sand.u32 %s80, 1
        %s317 = smul.addr %s316, 16
        %s318 = scalar_lea.vmem [#allocation5], %s317
        // Predicated region
        $region41: #{scaled_dot_product_attention.1} parent=35 // pred_check
          %p319 = pneg %p93
        $region42: #{scaled_dot_product_attention.1} parent=35 // pred_check_branch
          %321 = sbr.rel (%p319) target = $region44
        $region43: #{scaled_dot_product_attention.1} parent=35 // pred_region
          %322 = dma.done %s315, 256
        $region44: #{scaled_dot_product_attention.1} parent=35 // pred_fallthru
          _
        %s323 = sand.u32 %s32, 1
        %s324 = scalar_lea.sflag [#allocation6], %s323
        %s325 = sand.u32 %s106, 1
        %s326 = smul.addr %s325, 16
        %s327 = scalar_lea.vmem [#allocation7], %s326
        // Predicated region
        $region45: #{scaled_dot_product_attention.1} parent=35 // pred_check
          %p328 = pneg %p119
        $region46: #{scaled_dot_product_attention.1} parent=35 // pred_check_branch
          %330 = sbr.rel (%p328) target = $region48
        $region47: #{scaled_dot_product_attention.1} parent=35 // pred_region
          %331 = dma.done %s324, 256
        $region48: #{scaled_dot_product_attention.1} parent=35 // pred_fallthru
          _
        %s332 = sand.u32 %s132, 1
        %s333 = scalar_lea.sflag [#allocation9], %s332
        %s334 = sand.u32 %s132, 1
        %s335 = scalar_lea.vmem [#allocation8], %s334
        // Predicated region
        $region49: #{scaled_dot_product_attention.1} parent=35 // pred_check
          %p336 = pneg %p145
        $region50: #{scaled_dot_product_attention.1} parent=35 // pred_check_branch
          %338 = sbr.rel (%p336) target = $region52
        $region51: #{scaled_dot_product_attention.1} parent=35 // pred_region
          %339 = dma.done %s333, 16
        $region52: #{scaled_dot_product_attention.1} parent=35 // pred_fallthru
          _
        %s340 = sand.u32 %s54, 1
        %s341 = scalar_lea.sflag [#allocation3], %s340
        %s342 = sand.u32 %s54, 1
        %s343 = smul.addr %s342, 8
        %s344 = scalar_lea.vmem [#allocation2], %s343
        %p345 = pneg %p67
        %p346 = pneg %p64
        %s347 = sand.u32 %s32, 1
        %s348 = scalar_lea.sflag [#allocation6], %s347
        %s349 = sand.u32 %s80, 1
        %s350 = smul.addr %s349, 16
        %s351 = scalar_lea.vmem [#allocation5], %s350
        %p352 = pneg %p93
        %p353 = pneg %p90
        %s354 = sand.u32 %s32, 1
        %s355 = scalar_lea.sflag [#allocation6], %s354
        %s356 = sand.u32 %s106, 1
        %s357 = smul.addr %s356, 16
        %s358 = scalar_lea.vmem [#allocation7], %s357
        %p359 = pneg %p119
        %p360 = pneg %p116
        %s361 = sand.u32 %s132, 1
        %s362 = scalar_lea.sflag [#allocation9], %s361
        %s363 = sand.u32 %s132, 1
        %s364 = scalar_lea.vmem [#allocation8], %s363
        %p365 = pneg %p145
        %p366 = pneg %p142
        %p367 = pneg %p173
        %p368 = pneg %p170
        %s369 = sand.u32 %s160, 1
        %s370 = scalar_lea.sflag [#allocation4], %s369
        %s371 = sand.u32 %s160, 1
        %s372 = smul.addr %s371, 8
        %s373 = scalar_lea.vmem [#allocation10], %s372
        %p374 = pneg %p201
        %p375 = pneg %p198
        %s376 = sand.u32 %s188, 1
        %s377 = scalar_lea.sflag [#allocation12], %s376
        %s378 = sand.u32 %s188, 1
        %s379 = smul.addr %s378, 8
        %s380 = scalar_lea.vmem [#allocation11], %s379
        %v381 = vld [vmem:[%s309] sm:$0xff]
        %v382 = vmul.f32 %v381, 0.17677669
        %v383 = vld [vmem:[%s318] sm:$0xff]
        %v384 = vld [vmem:[%s318 + $0x8] sm:$0xff]
        %v385 = vld [vmem:[%s335] sm:$0x1]
        %v387 = vlaneseq
        %v388 = vshrl.u32 %v387, 7
        %v389 = vsub.s32 0, %v388
        %v390 = vrot.slane %v385, %v389
        %vm392 = vcmask 261120
        %v394 = vsel %vm392, %v382, 0
        %v397 = vsel %vm392, %v383, 0
        %v400 = vsel %vm392, %v384, 0
        %402 = vmatprep.subr.mxu0 0.0
        %403 = vmatpush1.xpose.msra.mxu0 %v397
        %404 = vmatprep.subr.mxu0 0.0
        %405 = vmatpush1.xpose.msra.mxu0 %v400
        %406 = vmatprep.subr.mxu0 0.0
        %407 = vmatpush1.xpose.msra.mxu0 0.0
        %408 = vmatprep.subr.mxu0 0.0
        %409 = vmatpush1.xpose.msra.mxu0 0.0
        %410 = vmatprep.subr.mxu0 0.0
        %411 = vmatpush1.xpose.msra.mxu0 0.0
        %412 = vmatprep.subr.mxu0 0.0
        %413 = vmatpush1.xpose.msra.mxu0 0.0
        %414 = vmatprep.subr.mxu0 0.0
        %415 = vmatpush1.xpose.msra.mxu0 0.0
        %416 = vmatprep.subr.mxu0 0.0
        %417 = vmatpush1.xpose.msra.mxu0 0.0
        %418 = vmatprep.subr.mxu0 0.0
        %419 = vmatpush1.xpose.msra.mxu0 0.0
        %420 = vmatprep.subr.mxu0 0.0
        %421 = vmatpush1.xpose.msra.mxu0 0.0
        %422 = vmatprep.subr.mxu0 0.0
        %423 = vmatpush1.xpose.msra.mxu0 0.0
        %424 = vmatprep.subr.mxu0 0.0
        %425 = vmatpush1.xpose.msra.mxu0 0.0
        %426 = vmatprep.subr.mxu0 0.0
        %427 = vmatpush1.xpose.msra.mxu0 0.0
        %428 = vmatprep.subr.mxu0 0.0
        %429 = vmatpush1.xpose.msra.mxu0 0.0
        %430 = vmatprep.subr.mxu0 0.0
        %431 = vmatpush1.xpose.msra.mxu0 0.0
        %432 = vmatprep.subr.mxu0 0.0
        %433 = vmatpush1.xpose.msra.mxu0 0.0
        %434 = vmatprep.subr.mxu0 0.0
        %435 = vmatpush1.xpose.msra.mxu0 0.0
        %436 = vmatprep.subr.mxu0 0.0
        %437 = vmatpush1.xpose.msra.mxu0 0.0
        %438 = vmatprep.subr.mxu0 0.0
        %439 = vmatpush1.xpose.msra.mxu0 0.0
        %440 = vmatprep.subr.mxu0 0.0
        %441 = vmatpush1.xpose.msra.mxu0 0.0
        %442 = vmatprep.subr.mxu0 0.0
        %443 = vmatpush1.xpose.msra.mxu0 0.0
        %444 = vmatprep.subr.mxu0 0.0
        %445 = vmatpush1.xpose.msra.mxu0 0.0
        %446 = vmatprep.subr.mxu0 0.0
        %447 = vmatpush1.xpose.msra.mxu0 0.0
        %448 = vmatprep.subr.mxu0 0.0
        %449 = vmatpush1.xpose.msra.mxu0 0.0
        %450 = vmatprep.subr.mxu0 0.0
        %451 = vmatpush1.xpose.msra.mxu0 0.0
        %452 = vmatprep.subr.mxu0 0.0
        %453 = vmatpush1.xpose.msra.mxu0 0.0
        %454 = vmatprep.subr.mxu0 0.0
        %455 = vmatpush1.xpose.msra.mxu0 0.0
        %456 = vmatprep.subr.mxu0 0.0
        %457 = vmatpush1.xpose.msra.mxu0 0.0
        %458 = vmatprep.subr.mxu0 0.0
        %459 = vmatpush1.xpose.msra.mxu0 0.0
        %460 = vmatprep.subr.mxu0 0.0
        %461 = vmatpush1.xpose.msra.mxu0 0.0
        %462 = vmatprep.subr.mxu0 0.0
        %463 = vmatpush1.xpose.msra.mxu0 0.0
        %464 = vmatprep.subr.mxu0 0.0
        %465 = vmatpush1.xpose.msra.mxu0 0.0
        %466 = vmatprep.mubr.f32.mxu0 0.0
        %467 = vmatmul.mubr.f32.gmra.mrb[0].mxu0 %v394
        %v468 = vpop.f32.mrb[0].mxu0
        %v469 = vadd.f32 %v390, %v468
        %v470 = vpop.f32.mrb[0].mxu0
        %471 = vdwg.mxu0
        %vm472 = vcmask 130048
        %v473 = vsel %vm472, %v469, -inf
        %474 = vmax.xlane.f32.xlu0 %v473
        %v475 = vpop.xlane.xlu0 %474
        %v476 = vsub.f32 %v469, %v475
        %v477 = vmul.f32 %v476, 1.442695
        %v478 = vpow.pop %v477
        %v479 = vsel %vm472, %v478, 0.0
        %480 = vadd.xlane.f32.xlu0 %v479
        %v481 = vpop.xlane.xlu0 %480
        %v482 = vrcp.pop %v481
        %v483 = vmul.f32 %v478, %v482
        %484 = vst.msk [vmem:[%s380] sm:$0xff] %vm472, %v483
        %v485 = vld [vmem:[%s327] sm:$0xff]
        %v486 = vld [vmem:[%s327 + $0x8] sm:$0xff]
        %v488 = vsel %vm472, %v483, 0
        %490 = vmatprep.subr.mxu0 0.0
        %491 = vmatpush1.msra.mxu0 %v485
        %492 = vmatprep.subr.mxu0 0.0
        %493 = vmatpush1.msra.mxu0 %v486
        %494 = vmatprep.subr.mxu0 0.0
        %495 = vmatpush1.msra.mxu0 0.0
        %496 = vmatprep.subr.mxu0 0.0
        %497 = vmatpush1.msra.mxu0 0.0
        %498 = vmatprep.subr.mxu0 0.0
        %499 = vmatpush1.msra.mxu0 0.0
        %500 = vmatprep.subr.mxu0 0.0
        %501 = vmatpush1.msra.mxu0 0.0
        %502 = vmatprep.subr.mxu0 0.0
        %503 = vmatpush1.msra.mxu0 0.0
        %504 = vmatprep.subr.mxu0 0.0
        %505 = vmatpush1.msra.mxu0 0.0
        %506 = vmatprep.subr.mxu0 0.0
        %507 = vmatpush1.msra.mxu0 0.0
        %508 = vmatprep.subr.mxu0 0.0
        %509 = vmatpush1.msra.mxu0 0.0
        %510 = vmatprep.subr.mxu0 0.0
        %511 = vmatpush1.msra.mxu0 0.0
        %512 = vmatprep.subr.mxu0 0.0
        %513 = vmatpush1.msra.mxu0 0.0
        %514 = vmatprep.subr.mxu0 0.0
        %515 = vmatpush1.msra.mxu0 0.0
        %516 = vmatprep.subr.mxu0 0.0
        %517 = vmatpush1.msra.mxu0 0.0
        %518 = vmatprep.subr.mxu0 0.0
        %519 = vmatpush1.msra.mxu0 0.0
        %520 = vmatprep.subr.mxu0 0.0
        %521 = vmatpush1.msra.mxu0 0.0
        %522 = vmatprep.subr.mxu0 0.0
        %523 = vmatpush1.msra.mxu0 0.0
        %524 = vmatprep.subr.mxu0 0.0
        %525 = vmatpush1.msra.mxu0 0.0
        %526 = vmatprep.subr.mxu0 0.0
        %527 = vmatpush1.msra.mxu0 0.0
        %528 = vmatprep.subr.mxu0 0.0
        %529 = vmatpush1.msra.mxu0 0.0
        %530 = vmatprep.subr.mxu0 0.0
        %531 = vmatpush1.msra.mxu0 0.0
        %532 = vmatprep.subr.mxu0 0.0
        %533 = vmatpush1.msra.mxu0 0.0
        %534 = vmatprep.subr.mxu0 0.0
        %535 = vmatpush1.msra.mxu0 0.0
        %536 = vmatprep.subr.mxu0 0.0
        %537 = vmatpush1.msra.mxu0 0.0
        %538 = vmatprep.subr.mxu0 0.0
        %539 = vmatpush1.msra.mxu0 0.0
        %540 = vmatprep.subr.mxu0 0.0
        %541 = vmatpush1.msra.mxu0 0.0
        %542 = vmatprep.subr.mxu0 0.0
        %543 = vmatpush1.msra.mxu0 0.0
        %544 = vmatprep.subr.mxu0 0.0
        %545 = vmatpush1.msra.mxu0 0.0
        %546 = vmatprep.subr.mxu0 0.0
        %547 = vmatpush1.msra.mxu0 0.0
        %548 = vmatprep.subr.mxu0 0.0
        %549 = vmatpush1.msra.mxu0 0.0
        %550 = vmatprep.subr.mxu0 0.0
        %551 = vmatpush1.msra.mxu0 0.0
        %552 = vmatprep.subr.mxu0 0.0
        %553 = vmatpush1.msra.mxu0 0.0
        %554 = vmatprep.mubr.f32.mxu0 0.0
        %555 = vmatmul.mubr.f32.gmra.mrb[0].mxu0 %v488
        %v556 = vpop.f32.mrb[0].mxu0
        %v557 = vadd.f32 0.0, %v556
        %v558 = vpop.f32.mrb[0].mxu0
        %559 = vdwg.mxu0
        %560 = vst.msk [vmem:[%s373] sm:$0xff] %vm392, %v557
        %s561 = sand.u32 %s160, 1
        %s562 = scalar_lea.sflag [#allocation4], %s561
        %s563 = sand.u32 %s160, 1
        %s564 = smul.addr %s563, 8
        %s565 = scalar_lea.vmem [#allocation10], %s564
        %s566 = sand.u32 %s188, 1
        %s567 = scalar_lea.sflag [#allocation12], %s566
        %s568 = sand.u32 %s188, 1
        %s569 = smul.addr %s568, 8
        %s570 = scalar_lea.vmem [#allocation11], %s569
        // Predicated region
        $region53: #{scaled_dot_product_attention.1} parent=35 // pred_check
          %p571 = pneg %p170
        $region54: #{scaled_dot_product_attention.1} parent=35 // pred_check_branch
          %573 = sbr.rel (%p571) target = $region56
        $region55: #{scaled_dot_product_attention.1} parent=35 // pred_region
          %s575 = ssub.s32 128, 128
          %576 = vsyncadd %s562, %s575
          %s577 = sadd.s32 %s37, %s36
          %s578 = smul.addr %s577, 128
          %s579 = scalar_lea.hbm %s4, %s578
          %s581 = sshll.u32 %s565, 4
          %s582 = int_to_ptr.vmem [resolvable:$true] %s581
          %584 = dma.vmem_to_hbm [thread:$0]  %s582, 128, %s579, %s562
        $region56: #{scaled_dot_product_attention.1} parent=35 // pred_fallthru
          _
        // Predicated region
        $region57: #{scaled_dot_product_attention.1} parent=35 // pred_check
          %p585 = pneg %p198
        $region58: #{scaled_dot_product_attention.1} parent=35 // pred_check_branch
          %587 = sbr.rel (%p585) target = $region60
        $region59: #{scaled_dot_product_attention.1} parent=35 // pred_region
          %s589 = ssub.s32 128, 128
          %590 = vsyncadd %s567, %s589
          %s591 = sadd.s32 %s37, %s36
          %s592 = smul.addr %s591, 128
          %s593 = scalar_lea.hbm %s5, %s592
          %s595 = sshll.u32 %s570, 4
          %s596 = int_to_ptr.vmem [resolvable:$true] %s595
          %598 = dma.vmem_to_hbm [thread:$0]  %s596, 128, %s593, %s567
        $region60: #{scaled_dot_product_attention.1} parent=35 // pred_fallthru
          _
      $region36: #{scaled_dot_product_attention.1} parent=5 // pred_fallthru
        _
      %p599 = scmp.le.s32.totalorder 2, %s27
      // Predicated region
      $region61: #{scaled_dot_product_attention.1} parent=5 // pred_check
        %p600 = pneg %p599
      $region62: #{scaled_dot_product_attention.1} parent=5 // pred_check_branch
        %602 = sbr.rel (%p600) target = $region64
      $region63: #{scaled_dot_product_attention.1} parent=5 // pred_region
        %s603 = ssub.s32 %s27, 2
        // Predicated region
        $region65: #{scaled_dot_product_attention.1} parent=63 // pred_check
          %p604 = pneg %p176
        $region66: #{scaled_dot_product_attention.1} parent=63 // pred_check_branch
          %606 = sbr.rel (%p604) target = $region68
        $region67: #{scaled_dot_product_attention.1} parent=63 // pred_region
          %s607 = sand.u32 %s161, 1
          %s608 = scalar_lea.sflag [#allocation4], %s607
          %s609 = sand.u32 %s161, 1
          %s610 = smul.addr %s609, 8
          %s611 = scalar_lea.vmem [#allocation10], %s610
          %612 = dma.done %s608, 128
        $region68: #{scaled_dot_product_attention.1} parent=63 // pred_fallthru
          _
        // Predicated region
        $region69: #{scaled_dot_product_attention.1} parent=63 // pred_check
          %p613 = pneg %p204
        $region70: #{scaled_dot_product_attention.1} parent=63 // pred_check_branch
          %615 = sbr.rel (%p613) target = $region72
        $region71: #{scaled_dot_product_attention.1} parent=63 // pred_region
          %s616 = sand.u32 %s189, 1
          %s617 = scalar_lea.sflag [#allocation12], %s616
          %s618 = sand.u32 %s189, 1
          %s619 = smul.addr %s618, 8
          %s620 = scalar_lea.vmem [#allocation11], %s619
          %621 = dma.done %s617, 128
        $region72: #{scaled_dot_product_attention.1} parent=63 // pred_fallthru
          _
      $region64: #{scaled_dot_product_attention.1} parent=5 // pred_fallthru
        _
    $region6: #{scaled_dot_product_attention.1} parent=1 // loop_footer
      %s31 = sadd.s32 1, %s27
    $region7: #{scaled_dot_product_attention.1} parent=1 // loop_footer_branch
      %26 = sbr.rel target = $region3
    $region8: #{scaled_dot_product_attention.1} parent=1 // loop_exit
      _
    %622 = vsyncpa [#allocation3], 1
    %s623 = scalar_lea.sflag [#allocation3], 1
    %624 = vsyncpa %s623, 1
    %625 = vsyncpa [#allocation6], 1
    %s626 = scalar_lea.sflag [#allocation6], 1
    %627 = vsyncpa %s626, 1
    %628 = vsyncpa [#allocation9], 1
    %s629 = scalar_lea.sflag [#allocation9], 1
    %630 = vsyncpa %s629, 1
    %631 = vsyncpa [#allocation4], 1
    %s632 = scalar_lea.sflag [#allocation4], 1
    %633 = vsyncpa %s632, 1
    %634 = vsyncpa [#allocation12], 1
    %s635 = scalar_lea.sflag [#allocation12], 1
    %636 = vsyncpa %s635, 1

</llo_original>
